<compile_context>
chip_gen: v5e
topology: v5e:2x2
jax: 0.10.0
libtpu: 0.0.40
codegen_flags: <defaults>
</compile_context>

<pallas_src>
import functools

import jax
import jax.numpy as jnp
from jax.experimental import pallas as pl
from jax.experimental.pallas import tpu as pltpu


# ----------------------------------------------------------------------------
# Hardware-aware sizing helpers
# ----------------------------------------------------------------------------

_TPU_CACHE = {}


def _vmem_capacity():
    if "cap" not in _TPU_CACHE:
        try:
            _TPU_CACHE["cap"] = int(pltpu.get_tpu_info().vmem_capacity_bytes)
        except Exception:                      # conservative fallback (v7x-sized)
            _TPU_CACHE["cap"] = 64 * 1024 * 1024
    return _TPU_CACHE["cap"]


def _vmem_limit():
    cap = _vmem_capacity()
    # ~5/8 of physical: ~80 MiB on v5e/v6e (128 MiB VMEM), ~40 MiB on v7x (64 MiB / TC).
    return max(32 * 1024 * 1024, min((cap * 5) // 8, 96 * 1024 * 1024))


def _prefs():
    if _vmem_capacity() >= 96 * 1024 * 1024:   # v5e / v6e: plenty of VMEM -> bigger tiles
        return {"tm": 512, "tn": 256, "tk": 512, "tq": 256, "tkv": 1024, "thw": 2048}
    # v7x: half the VMEM, 2 TCs; keep tiles modest and rely on grid parallelism.
    return {"tm": 256, "tn": 256, "tk": 512, "tq": 256, "tkv": 512, "thw": 1024}


def _cparams(*sems):
    return pltpu.CompilerParams(dimension_semantics=tuple(sems),
                                vmem_limit_bytes=_vmem_limit())


def _tile(n, pref, align):
    """Largest tile <= pref that divides n, snapped to a multiple of `align`
    (8 for sublane dims, 128 for lane dims).  If n <= pref the full dim is used
    (full-dim blocks are always legal)."""
    if n <= pref:
        return n
    t = (pref // align) * align
    while t >= align:
        if n % t == 0:
            return t
        t -= align
    t = pref                                    # rare fallback for awkward shapes
    while n % t:
        t -= 1
    return t


def _expand_lanes(col128, width):
    """col128: (rows, 128) with identical values in every lane -> (rows, width)."""
    rows = col128.shape[0]
    if width == 128:
        return col128
    if width < 128:
        return col128[:, :width]
    if width % 128 == 0:
        return jnp.tile(col128, (1, width // 128))
    return jnp.broadcast_to(col128[:, :1], (rows, width))


# ----------------------------------------------------------------------------
# Kernels
# ----------------------------------------------------------------------------

def _gn_sums_kernel(x_ref, s1_ref, s2_ref, acc1_ref, acc2_ref):
    """Per-channel sum / sum-of-squares over HW, tiled over HW (reduction axis last)."""
    j = pl.program_id(1)

    @pl.when(j == 0)
    def _():
        acc1_ref[...] = jnp.zeros_like(acc1_ref)
        acc2_ref[...] = jnp.zeros_like(acc2_ref)

    x = x_ref[0].astype(jnp.float32)                        # (C, thw)
    acc1_ref[...] += jnp.sum(x, axis=-1, keepdims=True)     # lane-replicated (C, 128) accum
    acc2_ref[...] += jnp.sum(x * x, axis=-1, keepdims=True)

    @pl.when(j == pl.num_programs(1) - 1)
    def _():
        s1_ref[0] = acc1_ref[:, 0:1]
        s2_ref[0] = acc2_ref[:, 0:1]


def _gn_norm_proj_in_kernel(x_ref, scale_ref, shift_ref, w_ref, b_ref, o_ref):
    """Normalize one (C, thw) tile and apply the 1x1 proj_in, writing token-major bf16."""
    xn = x_ref[0].astype(jnp.float32) * scale_ref[0] + shift_ref[0]      # (C, thw)
    # Token-major result via transposed-LHS contraction: no explicit transpose of the
    # big activation, and the MXU operand is bf16.
    y = jax.lax.dot_general(xn.astype(jnp.bfloat16), w_ref[...],
                            (((0,), (0,)), ((), ())),
                            preferred_element_type=jnp.float32)          # (thw, inner)
    o_ref[0] = (y + b_ref[...]).astype(o_ref.dtype)


def _qkv_proj_kernel(*refs, n_out, has_ln, ln_eps):
    """LayerNorm (optional, computed once) + one wide matmul against [w0|w1|...],
    split into n_out lane-dense outputs (fused q/k/v or k/v projections)."""
    i = 0
    x_ref = refs[i]; i += 1
    w_ref = refs[i]; i += 1
    if has_ln:
        g_ref, b_ref = refs[i], refs[i + 1]; i += 2
    out_refs = refs[i:i + n_out]

    x = x_ref[...].astype(jnp.float32)
    if has_ln:
        mu = jnp.mean(x, axis=-1, keepdims=True)
        var = jnp.mean(jnp.square(x - mu), axis=-1, keepdims=True)
        x = (x - mu) * jax.lax.rsqrt(var + ln_eps)
        x = x * g_ref[...].astype(jnp.float32) + b_ref[...].astype(jnp.float32)

    y = jnp.dot(x.astype(jnp.bfloat16), w_ref[...],
                preferred_element_type=jnp.float32)                      # (tm, n_out*inner)
    inner = y.shape[-1] // n_out
    for t in range(n_out):
        out_refs[t][...] = y[:, t * inner:(t + 1) * inner].astype(out_refs[t].dtype)


def _linear_kernel(*refs, has_bias, has_res, multi_k):
    """Tiled matmul with fused bias / residual epilogues.  The f32 accumulator scratch is
    only present when K is tiled (multi_k)."""
    i = 0
    x_ref = refs[i]; i += 1
    w_ref = refs[i]; i += 1
    bias_ref = None
    res_ref = None
    if has_bias:
        bias_ref = refs[i]; i += 1
    if has_res:
        res_ref = refs[i]; i += 1
    o_ref = refs[i]; i += 1
    acc_ref = refs[i] if multi_k else None

    part = jnp.dot(x_ref[...].astype(jnp.bfloat16), w_ref[...],
                   preferred_element_type=jnp.float32)

    def _finish(r):
        if has_bias:
            r = r + bias_ref[...].astype(jnp.float32)
        if has_res:
            r = r + res_ref[...].astype(jnp.float32)
        o_ref[...] = r.astype(o_ref.dtype)

    if not multi_k:
        _finish(part)
    else:
        kk = pl.program_id(2)

        @pl.when(kk == 0)
        def _():
            acc_ref[...] = jnp.zeros_like(acc_ref)

        acc_ref[...] += part

        @pl.when(kk == pl.num_programs(2) - 1)
        def _():
            _finish(acc_ref[...])


def _ff_geglu_kernel(x_ref, wa_ref, wg_ref, ba_ref, bg_ref, g_ref, b_ref, o_ref, *, eps):
    """LayerNorm + GEGLU: value/gate halves are two N-tiles of the same weight array."""
    x = x_ref[...].astype(jnp.float32)                     # (tm, K)
    mu = jnp.mean(x, axis=-1, keepdims=True)
    var = jnp.mean(jnp.square(x - mu), axis=-1, keepdims=True)
    xn = (x - mu) * jax.lax.rsqrt(var + eps)
    xn = xn * g_ref[...].astype(jnp.float32) + b_ref[...].astype(jnp.float32)
    xb = xn.astype(jnp.bfloat16)
    a = jnp.dot(xb, wa_ref[...], preferred_element_type=jnp.float32) + ba_ref[...]
    g = jnp.dot(xb, wg_ref[...], preferred_element_type=jnp.float32) + bg_ref[...]
    o_ref[...] = (a * jax.nn.gelu(g, approximate=False)).astype(o_ref.dtype)


def _flash_attn_kernel(q_ref, k_ref, v_ref, o_ref, m_scr, l_scr, acc_scr,
                       *, heads, d_head, scale):
    ki = pl.program_id(2)

    @pl.when(ki == 0)
    def _():
        m_scr[...] = jnp.full_like(m_scr, -jnp.inf)
        l_scr[...] = jnp.zeros_like(l_scr)
        acc_scr[...] = jnp.zeros_like(acc_scr)

    q = q_ref[0]                                           # (tq, inner) bf16, heads interleaved
    k = k_ref[0]                                           # (tkv, inner)
    v = v_ref[0]
    tkv = k.shape[0]

    acc_prev = acc_scr[...]                                # (tq, inner) f32
    alpha_cols = []
    pv_cols = []
    for h in range(heads):                                 # static per-head loop
        sl = slice(h * d_head, (h + 1) * d_head)
        qh, kh, vh = q[:, sl], k[:, sl], v[:, sl]
        # QK^T: contract the last dims (no K transpose materialized).
        s = jax.lax.dot_general(qh, kh, (((1,), (1,)), ((), ())),
                                preferred_element_type=jnp.float32) * scale   # (tq, tkv)
        m_prev = m_scr[h]                                  # (tq, 128) lane-replicated, dense
        l_prev = l_scr[h]
        m_new = jnp.maximum(m_prev, jnp.max(s, axis=-1, keepdims=True))       # (tq, 128)
        alpha = jnp.exp(m_prev - m_new)                                       # (tq, 128)
        if tkv % 128 == 0:
            p = jnp.exp(s - _expand_lanes(m_new, tkv))
        else:
            p = jnp.exp(s - m_new[:, :1])
        l_scr[h] = alpha * l_prev + jnp.sum(p, axis=-1, keepdims=True)        # dense store
        m_scr[h] = m_new                                                      # dense store
        pv_cols.append(jnp.dot(p.astype(jnp.bfloat16), vh,
                               preferred_element_type=jnp.float32))           # (tq, d_head)
        alpha_cols.append(_expand_lanes(alpha, d_head))

    # One full-width (lane-dense) accumulator update per kv step.
    acc_scr[...] = (jnp.concatenate(alpha_cols, axis=-1) * acc_prev +
                    jnp.concatenate(pv_cols, axis=-1))

    @pl.when(ki == pl.num_programs(2) - 1)
    def _():
        inv_cols = [_expand_lanes(pl.reciprocal(l_scr[h], approx=True), d_head)
                    for h in range(heads)]
        o_ref[0] = (acc_scr[...] * jnp.concatenate(inv_cols, axis=-1)).astype(o_ref.dtype)


def _proj_out_kernel(t_ref, w_ref, b_ref, xin_ref, o_ref):
    """1x1 proj_out + token->NCHW relayout + final residual for one HW tile.  The weight is
    carried pre-transposed (C, inner) so the (C, thw) tile is produced directly."""
    y = jax.lax.dot_general(w_ref[...], t_ref[0], (((1,), (1,)), ((), ())),
                            preferred_element_type=jnp.float32)           # (C, thw)
    o_ref[0] = (y + b_ref[...] + xin_ref[0].astype(jnp.float32)).astype(o_ref.dtype)


# ----------------------------------------------------------------------------
# Pallas wrappers
# ----------------------------------------------------------------------------

def gn_proj_in(x, gn_w, gn_b, w_bf16, b_row, num_groups=32, eps=1e-6):
    """GroupNorm(32) + 1x1 proj_in, HW-tiled.  Returns token-major (B, HW, inner) bf16."""
    pf = _prefs()
    bsz, c, hgt, wd = x.shape
    hw = hgt * wd
    inner = w_bf16.shape[1]
    x3 = x.reshape(bsz, c, hw)
    thw = _tile(hw, pf["thw"], 128)
    n_hw = hw // thw

    # Pass 1 (Pallas): per-channel sums over HW.
    s1, s2 = pl.pallas_call(
        _gn_sums_kernel,
        grid=(bsz, n_hw),
        in_specs=[pl.BlockSpec((1, c, thw), lambda b, j: (b, 0, j))],
        out_specs=(pl.BlockSpec((1, c, 1), lambda b, j: (b, 0, 0)),
                   pl.BlockSpec((1, c, 1), lambda b, j: (b, 0, 0))),
        out_shape=(jax.ShapeDtypeStruct((bsz, c, 1), jnp.float32),
                   jax.ShapeDtypeStruct((bsz, c, 1), jnp.float32)),
        scratch_shapes=[pltpu.VMEM((c, 128), jnp.float32),
                        pltpu.VMEM((c, 128), jnp.float32)],
        compiler_params=_cparams("parallel", "arbitrary"),
    )(x3)

    # Tiny O(B*C) glue: group statistics -> per-channel scale/shift (f32).
    # Note: one-pass E[x^2]-mean^2 in f32; fine for normalized UNet activations.
    cg = c // num_groups
    gs1 = s1[..., 0].reshape(bsz, num_groups, cg).sum(-1)
    gs2 = s2[..., 0].reshape(bsz, num_groups, cg).sum(-1)
    n = float(cg * hw)
    mean = gs1 / n
    var = jnp.maximum(gs2 / n - mean * mean, 0.0)
    rstd = jax.lax.rsqrt(var + eps)
    mean_c = jnp.repeat(mean, cg, axis=1)
    rstd_c = jnp.repeat(rstd, cg, axis=1)
    scale = (gn_w[None, :] * rstd_c).reshape(bsz, c, 1).astype(jnp.float32)
    shift = (gn_b[None, :] - mean_c * gn_w[None, :] * rstd_c).reshape(bsz, c, 1).astype(jnp.float32)

    # Pass 2 (Pallas): normalize + proj_in, writing token-major bf16 tiles.
    return pl.pallas_call(
        _gn_norm_proj_in_kernel,
        grid=(bsz, n_hw),
        in_specs=[pl.BlockSpec((1, c, thw), lambda b, j: (b, 0, j)),
                  pl.BlockSpec((1, c, 1), lambda b, j: (b, 0, 0)),
                  pl.BlockSpec((1, c, 1), lambda b, j: (b, 0, 0)),
                  pl.BlockSpec((c, inner), lambda b, j: (0, 0)),
                  pl.BlockSpec((1, inner), lambda b, j: (0, 0))],
        out_specs=pl.BlockSpec((1, thw, inner), lambda b, j: (b, j, 0)),
        out_shape=jax.ShapeDtypeStruct((bsz, hw, inner), jnp.bfloat16),
        compiler_params=_cparams("parallel", "parallel"),
    )(x3, scale, shift, w_bf16, b_row)


def fused_qkv_proj(x2d, w_cat, n_out, ln=None, ln_eps=1e-5, out_dtype=jnp.bfloat16):
    """out_t = [LN](x) @ w_cat[:, t*inner:(t+1)*inner] for t in range(n_out), one kernel."""
    pf = _prefs()
    m, k = x2d.shape
    n_total = w_cat.shape[1]
    inner = n_total // n_out
    tm = _tile(m, pf["tm"], 8)

    in_specs = [pl.BlockSpec((tm, k), lambda i: (i, 0)),
                pl.BlockSpec((k, n_total), lambda i: (0, 0))]
    args = [x2d, w_cat]
    if ln is not None:
        g, b = ln
        in_specs += [pl.BlockSpec((1, k), lambda i: (0, 0)),
                     pl.BlockSpec((1, k), lambda i: (0, 0))]
        args += [g, b]

    out_specs = tuple(pl.BlockSpec((tm, inner), lambda i: (i, 0)) for _ in range(n_out))
    out_shape = tuple(jax.ShapeDtypeStruct((m, inner), out_dtype) for _ in range(n_out))
    outs = pl.pallas_call(
        functools.partial(_qkv_proj_kernel, n_out=n_out, has_ln=ln is not None,
                          ln_eps=ln_eps),
        grid=(m // tm,),
        in_specs=in_specs,
        out_specs=out_specs,
        out_shape=out_shape,
        compiler_params=_cparams("parallel"),
    )(*args)
    if not isinstance(outs, (list, tuple)):
        outs = (outs,)
    return tuple(outs)


def fused_linear(x2d, w, bias=None, residual=None, out_dtype=None):
    """out = x @ w [+ bias] [+ residual]; bf16 MXU operands, f32 accumulation."""
    pf = _prefs()
    m, k = x2d.shape
    n = w.shape[1]
    tm = _tile(m, pf["tm"], 8)
    tn = _tile(n, pf["tn"], 128)
    tk = _tile(k, pf["tk"], 128)
    k_steps = k // tk
    multi_k = k_steps > 1
    out_dtype = out_dtype or x2d.dtype

    if multi_k:
        grid = (m // tm, n // tn, k_steps)
        x_map = lambda i, j, kk: (i, kk)
        w_map = lambda i, j, kk: (kk, j)
        o_map = lambda i, j, kk: (i, j)
        v_map = lambda i, j, kk: (0, j)
        sems = ("parallel", "parallel", "arbitrary")
        scratch = [pltpu.VMEM((tm, tn), jnp.float32)]
    else:
        grid = (m // tm, n // tn)
        x_map = lambda i, j: (i, 0)
        w_map = lambda i, j: (0, j)
        o_map = lambda i, j: (i, j)
        v_map = lambda i, j: (0, j)
        sems = ("parallel", "parallel")
        scratch = []

    in_specs = [pl.BlockSpec((tm, tk), x_map), pl.BlockSpec((tk, tn), w_map)]
    args = [x2d, w]
    if bias is not None:
        in_specs.append(pl.BlockSpec((1, tn), v_map))
        args.append(bias)
    if residual is not None:
        in_specs.append(pl.BlockSpec((tm, tn), o_map))
        args.append(residual)

    kernel = functools.partial(_linear_kernel, has_bias=bias is not None,
                               has_res=residual is not None, multi_k=multi_k)
    return pl.pallas_call(
        kernel,
        grid=grid,
        in_specs=in_specs,
        out_specs=pl.BlockSpec((tm, tn), o_map),
        out_shape=jax.ShapeDtypeStruct((m, n), out_dtype),
        scratch_shapes=scratch,
        compiler_params=_cparams(*sems),
    )(*args)


def ff_geglu(x2d, w1, b1_row, ln_g_row, ln_b_row, ff_inner, eps=1e-5):
    """LayerNorm + GEGLU projection; w1 addressed twice via offset BlockSpecs (no slices)."""
    pf = _prefs()
    m, k = x2d.shape
    tm = _tile(m, pf["tm"], 8)
    tn = _tile(ff_inner, pf["tn"], 128)
    nb = ff_inner // tn
    return pl.pallas_call(
        functools.partial(_ff_geglu_kernel, eps=eps),
        grid=(m // tm, ff_inner // tn),
        in_specs=[pl.BlockSpec((tm, k), lambda i, j: (i, 0)),
                  pl.BlockSpec((k, tn), lambda i, j: (0, j)),         # w1 "value" half
                  pl.BlockSpec((k, tn), lambda i, j: (0, j + nb)),    # w1 "gate" half
                  pl.BlockSpec((1, tn), lambda i, j: (0, j)),
                  pl.BlockSpec((1, tn), lambda i, j: (0, j + nb)),
                  pl.BlockSpec((1, k), lambda i, j: (0, 0)),
                  pl.BlockSpec((1, k), lambda i, j: (0, 0))],
        out_specs=pl.BlockSpec((tm, tn), lambda i, j: (i, j)),
        out_shape=jax.ShapeDtypeStruct((m, ff_inner), jnp.bfloat16),
        compiler_params=_cparams("parallel", "parallel"),
    )(x2d, w1, w1, b1_row, b1_row, ln_g_row, ln_b_row)


def flash_attention(q, k, v, n_heads, d_head):
    pf = _prefs()
    bsz, nq, inner = q.shape
    nk = k.shape[1]
    tq = _tile(nq, pf["tq"], 8)
    tkv = _tile(nk, pf["tkv"], 8)
    kernel = functools.partial(_flash_attn_kernel, heads=n_heads, d_head=d_head,
                               scale=float(d_head) ** -0.5)
    return pl.pallas_call(
        kernel,
        grid=(bsz, nq // tq, nk // tkv),
        in_specs=[pl.BlockSpec((1, tq, inner), lambda b, qi, ki: (b, qi, 0)),
                  pl.BlockSpec((1, tkv, inner), lambda b, qi, ki: (b, ki, 0)),
                  pl.BlockSpec((1, tkv, inner), lambda b, qi, ki: (b, ki, 0))],
        out_specs=pl.BlockSpec((1, tq, inner), lambda b, qi, ki: (b, qi, 0)),
        out_shape=jax.ShapeDtypeStruct((bsz, nq, inner), jnp.bfloat16),
        scratch_shapes=[pltpu.VMEM((n_heads, tq, 128), jnp.float32),
                        pltpu.VMEM((n_heads, tq, 128), jnp.float32),
                        pltpu.VMEM((tq, inner), jnp.float32)],
        compiler_params=_cparams("parallel", "parallel", "arbitrary"),
    )(q, k, v)


def proj_out_residual(t, w_t_bf16, b_col, x_in):
    """Zero-init 1x1 proj_out + token->NCHW relayout + final residual, HW-tiled."""
    pf = _prefs()
    bsz, hw, inner = t.shape
    c = w_t_bf16.shape[0]
    x3 = x_in.reshape(bsz, c, hw)
    thw = _tile(hw, pf["thw"], 128)
    n_hw = hw // thw
    out = pl.pallas_call(
        _proj_out_kernel,
        grid=(bsz, n_hw),
        in_specs=[pl.BlockSpec((1, thw, inner), lambda b, j: (b, j, 0)),
                  pl.BlockSpec((c, inner), lambda b, j: (0, 0)),
                  pl.BlockSpec((c, 1), lambda b, j: (0, 0)),
                  pl.BlockSpec((1, c, thw), lambda b, j: (b, 0, j))],
        out_specs=pl.BlockSpec((1, c, thw), lambda b, j: (b, 0, j)),
        out_shape=jax.ShapeDtypeStruct((bsz, c, hw), x_in.dtype),
        compiler_params=_cparams("parallel", "parallel"),
    )(t, w_t_bf16, b_col, x3)
    return out.reshape(x_in.shape)


# ----------------------------------------------------------------------------
# Module forward (Pallas-backed)
# ----------------------------------------------------------------------------

def attention_block(t, context, p, ln, n_heads, d_head):
    """x = CrossAttention(LayerNorm(x), context) + x (LN / qkv / bias / residual fused)."""
    bsz, ntok, dim = t.shape
    x2 = t.reshape(bsz * ntok, dim)
    if context is None:                                     # self-attn: one fused qkv pass
        q2, k2, v2 = fused_qkv_proj(x2, p["wqkv"], 3, ln=ln)
        nk = ntok
    else:                                                   # cross-attn: q from x, fused kv
        (q2,) = fused_qkv_proj(x2, p["wq"], 1, ln=ln)
        cb, cn, cd = context.shape
        c2 = context.reshape(cb * cn, cd)
        k2, v2 = fused_qkv_proj(c2, p["wkv"], 2)
        nk = cn
    q = q2.reshape(bsz, ntok, dim)
    k = k2.reshape(bsz, nk, dim)
    v = v2.reshape(bsz, nk, dim)
    o = flash_attention(q, k, v, n_heads, d_head)           # (B, N, inner), heads interleaved
    out = fused_linear(o.reshape(bsz * ntok, dim), p["wo"], bias=p["bo"],
                       residual=x2, out_dtype=jnp.bfloat16)
    return out.reshape(bsz, ntok, dim)


def ff_block(t, p, ln, ff_inner):
    """x = FeedForward(LayerNorm(x)) + x, GEGLU + LN + residual fused."""
    bsz, ntok, dim = t.shape
    x2 = t.reshape(bsz * ntok, dim)
    h = ff_geglu(x2, p["w1"], p["b1"], ln[0], ln[1], ff_inner)      # (M, ff_inner) bf16
    out = fused_linear(h, p["w2"], bias=p["b2"], residual=x2, out_dtype=jnp.bfloat16)
    return out.reshape(bsz, ntok, dim)


def spatial_transformer(x, context, prep, n_heads, d_head):
    inner = n_heads * d_head
    ff_inner = 4 * inner
    x_in = x

    # GroupNorm + proj_in (1x1 conv); output already token-major (B, HW, inner) bf16.
    t = gn_proj_in(x, prep["gn_w"], prep["gn_b"], prep["proj_in_w"], prep["proj_in_b"])

    # BasicTransformerBlock (depth=1).
    t = attention_block(t, None, prep["attn1"], prep["ln1"], n_heads, d_head)
    t = attention_block(t, context, prep["attn2"], prep["ln2"], n_heads, d_head)
    t = ff_block(t, prep["ff"], prep["ln3"], ff_inner)
    hidden = t

    # proj_out (zero-init 1x1 conv) + token->NCHW relayout + residual fused.
    out = proj_out_residual(t, prep["proj_out_wt"], prep["proj_out_b"], x_in)
    return out, hidden


# ----------------------------------------------------------------------------
# Parameter preparation (bf16 weights, fused qkv / kv, reshaped biases) — done once.
# ----------------------------------------------------------------------------

def prepare_params(P):
    bf16 = lambda a: a.astype(jnp.bfloat16)
    row = lambda a: a.reshape(1, -1).astype(jnp.float32)
    return {
        "gn_w": P["gn_w"].astype(jnp.float32),
        "gn_b": P["gn_b"].astype(jnp.float32),
        "proj_in_w": bf16(P["proj_in_w"]),
        "proj_in_b": row(P["proj_in_b"]),
        "ln1": (row(P["ln1_w"]), row(P["ln1_b"])),
        "ln2": (row(P["ln2_w"]), row(P["ln2_b"])),
        "ln3": (row(P["ln3_w"]), row(P["ln3_b"])),
        "attn1": {
            "wqkv": bf16(jnp.concatenate([P["attn1"]["wq"], P["attn1"]["wk"],
                                          P["attn1"]["wv"]], axis=1)),
            "wo": bf16(P["attn1"]["wo"]),
            "bo": row(P["attn1"]["bo"]),
        },
        "attn2": {
            "wq": bf16(P["attn2"]["wq"]),
            "wkv": bf16(jnp.concatenate([P["attn2"]["wk"], P["attn2"]["wv"]], axis=1)),
            "wo": bf16(P["attn2"]["wo"]),
            "bo": row(P["attn2"]["bo"]),
        },
        "ff": {
            "w1": bf16(P["ff"]["w1"]),
            "b1": row(P["ff"]["b1"]),
            "w2": bf16(P["ff"]["w2"]),
            "b2": row(P["ff"]["b2"]),
        },
        "proj_out_wt": bf16(P["proj_out_w"].T),             # (C, inner), channel-major
        "proj_out_b": P["proj_out_b"].reshape(-1, 1).astype(jnp.float32),
    }


# ----------------------------------------------------------------------------
# Pure-JAX reference (f32, HIGHEST precision) for the correctness check
# ----------------------------------------------------------------------------

def reference_forward(x, context, P, n_heads, d_head, num_groups=32):
    hp = jax.lax.Precision.HIGHEST
    bsz, c, h, w = x.shape
    inner = n_heads * d_head
    ff_inner = 4 * inner
    x_in = x

    xr = x.reshape(bsz, num_groups, (c // num_groups) * h * w)
    mean = xr.mean(-1, keepdims=True)
    var = ((xr - mean) ** 2).mean(-1, keepdims=True)
    xn = ((xr - mean) / jnp.sqrt(var + 1e-6)).reshape(bsz, c, h, w)
    xn = xn * P["gn_w"][None, :, None, None] + P["gn_b"][None, :, None, None]

    t = xn.transpose(0, 2, 3, 1).reshape(bsz, h * w, c)
    t = jnp.dot(t, P["proj_in_w"], precision=hp) + P["proj_in_b"]

    def ln(z, g, b):
        m = z.mean(-1, keepdims=True)
        v = ((z - m) ** 2).mean(-1, keepdims=True)
        return (z - m) / jnp.sqrt(v + 1e-5) * g + b

    def attn(z, ctx, p):
        ctx = z if ctx is None else ctx
        q = jnp.dot(z, p["wq"], precision=hp)
        k = jnp.dot(ctx, p["wk"], precision=hp)
        v = jnp.dot(ctx, p["wv"], precision=hp)

        def split(u):
            return u.reshape(u.shape[0], u.shape[1], n_heads, d_head).transpose(0, 2, 1, 3)

        qh, kh, vh = split(q), split(k), split(v)
        sim = jnp.einsum("bhid,bhjd->bhij", qh, kh, precision=hp) * (d_head ** -0.5)
        a = jax.nn.softmax(sim, axis=-1)
        o = jnp.einsum("bhij,bhjd->bhid", a, vh, precision=hp)
        o = o.transpose(0, 2, 1, 3).reshape(z.shape[0], z.shape[1], inner)
        return jnp.dot(o, p["wo"], precision=hp) + p["bo"]

    def ff(z, p):
        hdn = jnp.dot(z, p["w1"], precision=hp) + p["b1"]
        a, gate = hdn[..., :ff_inner], hdn[..., ff_inner:]
        hdn = a * jax.nn.gelu(gate, approximate=False)
        return jnp.dot(hdn, p["w2"], precision=hp) + p["b2"]

    t = attn(ln(t, P["ln1_w"], P["ln1_b"]), None, P["attn1"]) + t
    t = attn(ln(t, P["ln2_w"], P["ln2_b"]), context, P["attn2"]) + t
    t = ff(ln(t, P["ln3_w"], P["ln3_b"]), P["ff"]) + t
    hidden = t

    out_tok = jnp.dot(t, P["proj_out_w"], precision=hp) + P["proj_out_b"]
    out = out_tok.reshape(bsz, h, w, c).transpose(0, 3, 1, 2) + x_in
    return out, hidden


# ----------------------------------------------------------------------------
# Deterministic synthetic parameters (shapes from SpatialTransformer.__init__)
# ----------------------------------------------------------------------------

def init_params(key, c, n_heads, d_head, context_dim, dtype=jnp.float32):
    inner = n_heads * d_head
    ff_inner = 4 * inner
    ks = jax.random.split(key, 16)

    def w(k, shape):
        return jax.random.normal(k, shape, dtype) * 0.02

    return {
        "gn_w": jnp.ones((c,), dtype), "gn_b": jnp.zeros((c,), dtype),
        "proj_in_w": w(ks[0], (c, inner)), "proj_in_b": w(ks[1], (inner,)),
        "ln1_w": jnp.ones((inner,), dtype), "ln1_b": jnp.zeros((inner,), dtype),
        "ln2_w": jnp.ones((inner,), dtype), "ln2_b": jnp.zeros((inner,), dtype),
        "ln3_w": jnp.ones((inner,), dtype), "ln3_b": jnp.zeros((inner,), dtype),
        "attn1": {
            "wq": w(ks[2], (inner, inner)), "wk": w(ks[3], (inner, inner)),
            "wv": w(ks[4], (inner, inner)),
            "wo": w(ks[5], (inner, inner)), "bo": w(ks[6], (inner,)),
        },
        "attn2": {
            "wq": w(ks[7], (inner, inner)), "wk": w(ks[8], (context_dim, inner)),
            "wv": w(ks[9], (context_dim, inner)),
            "wo": w(ks[10], (inner, inner)), "bo": w(ks[11], (inner,)),
        },
        "ff": {
            "w1": w(ks[12], (inner, 2 * ff_inner)), "b1": w(ks[13], (2 * ff_inner,)),
            "w2": w(ks[14], (ff_inner, inner)), "b2": w(ks[15], (inner,)),
        },
        "proj_out_w": jnp.zeros((inner, c), dtype),
        "proj_out_b": jnp.zeros((c,), dtype),
    }


if __name__ == "__main__":
    key = jax.random.PRNGKey(0)
    B, C, H, W = 2, 32, 8, 8          # in_channels must be divisible by 32 (GroupNorm)
    n_heads, d_head = 2, 16           # inner_dim = 32
    ctx_len, context_dim = 8, 16

    kx, kc, kp = jax.random.split(key, 3)
    x = jax.random.normal(kx, (B, C, H, W), jnp.float32)
    context = jax.random.normal(kc, (B, ctx_len, context_dim), jnp.float32)
    P = init_params(kp, C, n_heads, d_head, context_dim)
    prep = prepare_params(P)

    out, hidden = spatial_transformer(x, context, prep, n_heads, d_head)
    out = jax.block_until_ready(out)
    hidden = jax.block_until_ready(hidden)

    out_ref, hidden_ref = reference_forward(x, context, P, n_heads, d_head)
    # bf16 weights/activations (f32 accumulation / statistics) vs a HIGHEST-precision f32 ref.
    assert jnp.allclose(hidden.astype(jnp.float32), hidden_ref, atol=2e-2, rtol=2e-2), \
        "hidden mismatch"
    assert jnp.allclose(out, out_ref, atol=2e-2, rtol=2e-2), "output mismatch"
    # proj_out is zero-initialized, so the module output must equal the residual input.
    assert jnp.allclose(out, x, atol=1e-5), "residual mismatch"

    print("KERNEL_OK")
</pallas_src>

<mosaic_0001>
module attributes {stable_mosaic.version = 11 : i64} {
  func.func @_gn_sums_kernel(%arg0: i32, %arg1: i32, %arg2: memref<1x32x64xf32, #tpu.memory_space<vmem>>, %arg3: memref<1x32x1xf32, #tpu.memory_space<vmem>>, %arg4: memref<1x32x1xf32, #tpu.memory_space<vmem>>, %arg5: memref<32x128xf32, #tpu.memory_space<vmem>>, %arg6: memref<32x128xf32, #tpu.memory_space<vmem>>) attributes {dimension_semantics = [#tpu.dimension_semantics<parallel>, #tpu.dimension_semantics<arbitrary>], iteration_bounds = array<i64: 2, 1>, scalar_prefetch = 0 : i64, scratch_operands = 2 : i64, tpu.core_type = #tpu.core_type<tc>, window_params = [{transform_indices = @transform_0, window_bounds = array<i64: 1, 32, 64>}, {transform_indices = @transform_1, window_bounds = array<i64: 1, 32, 1>}, {transform_indices = @transform_2, window_bounds = array<i64: 1, 32, 1>}]} {
    %c0_i32 = arith.constant 0 : i32
    %0 = arith.cmpi eq, %arg1, %c0_i32 : i32
    %1 = arith.extui %0 : i1 to i32
    %c0_i32_0 = arith.constant 0 : i32
    %2 = arith.cmpi ne, %1, %c0_i32_0 : i32
    scf.if %2 {
      %cst_14 = arith.constant 0.000000e+00 : f32
      %21 = vector.broadcast %cst_14 : f32 to vector<32x128xf32>
      %c0_15 = arith.constant 0 : index
      %c0_16 = arith.constant 0 : index
      %22 = vector.load %arg5[%c0_15, %c0_16] : memref<32x128xf32, #tpu.memory_space<vmem>>, vector<32x128xf32>
      tpu.vector_store %arg5[%c0_15, %c0_16], %21 {strides = array<i32>} : memref<32x128xf32, #tpu.memory_space<vmem>>, vector<32x128xf32>,
      %cst_17 = arith.constant 0.000000e+00 : f32
      %23 = vector.broadcast %cst_17 : f32 to vector<32x128xf32>
      %c0_18 = arith.constant 0 : index
      %c0_19 = arith.constant 0 : index
      %24 = vector.load %arg6[%c0_18, %c0_19] : memref<32x128xf32, #tpu.memory_space<vmem>>, vector<32x128xf32>
      tpu.vector_store %arg6[%c0_18, %c0_19], %23 {strides = array<i32>} : memref<32x128xf32, #tpu.memory_space<vmem>>, vector<32x128xf32>,
    } else {
    }
    %c0 = arith.constant 0 : index
    %c0_1 = arith.constant 0 : index
    %c0_2 = arith.constant 0 : index
    %3 = vector.load %arg2[%c0, %c0_1, %c0_2] : memref<1x32x64xf32, #tpu.memory_space<vmem>>, vector<1x32x64xf32>
    %4 = vector.shape_cast %3 : vector<1x32x64xf32> to vector<32x64xf32>
    %c0_3 = arith.constant 0 : index
    %c0_4 = arith.constant 0 : index
    %5 = vector.load %arg5[%c0_3, %c0_4] : memref<32x128xf32, #tpu.memory_space<vmem>>, vector<32x128xf32>
    %cst = arith.constant dense<0.000000e+00> : vector<32xf32>
    %6 = vector.multi_reduction <add>, %4, %cst [1] : vector<32x64xf32> to vector<32xf32>
    %7 = vector.shape_cast %6 : vector<32xf32> to vector<32x1xf32>
    %8 = vector.broadcast %7 : vector<32x1xf32> to vector<32x128xf32>
    %9 = arith.addf %5, %8 : vector<32x128xf32>
    %c0_5 = arith.constant 0 : index
    %c0_6 = arith.constant 0 : index
    %10 = vector.load %arg5[%c0_5, %c0_6] : memref<32x128xf32, #tpu.memory_space<vmem>>, vector<32x128xf32>
    tpu.vector_store %arg5[%c0_5, %c0_6], %9 {strides = array<i32>} : memref<32x128xf32, #tpu.memory_space<vmem>>, vector<32x128xf32>,
    %c0_7 = arith.constant 0 : index
    %c0_8 = arith.constant 0 : index
    %11 = vector.load %arg6[%c0_7, %c0_8] : memref<32x128xf32, #tpu.memory_space<vmem>>, vector<32x128xf32>
    %12 = arith.mulf %4, %4 : vector<32x64xf32>
    %cst_9 = arith.constant dense<0.000000e+00> : vector<32xf32>
    %13 = vector.multi_reduction <add>, %12, %cst_9 [1] : vector<32x64xf32> to vector<32xf32>
    %14 = vector.shape_cast %13 : vector<32xf32> to vector<32x1xf32>
    %15 = vector.broadcast %14 : vector<32x1xf32> to vector<32x128xf32>
    %16 = arith.addf %11, %15 : vector<32x128xf32>
    %c0_10 = arith.constant 0 : index
    %c0_11 = arith.constant 0 : index
    %17 = vector.load %arg6[%c0_10, %c0_11] : memref<32x128xf32, #tpu.memory_space<vmem>>, vector<32x128xf32>
    tpu.vector_store %arg6[%c0_10, %c0_11], %16 {strides = array<i32>} : memref<32x128xf32, #tpu.memory_space<vmem>>, vector<32x128xf32>,
    %c0_i32_12 = arith.constant 0 : i32
    %18 = arith.cmpi eq, %arg1, %c0_i32_12 : i32
    %19 = arith.extui %18 : i1 to i32
    %c0_i32_13 = arith.constant 0 : i32
    %20 = arith.cmpi ne, %19, %c0_i32_13 : i32
    scf.if %20 {
      %c0_14 = arith.constant 0 : index
      %c0_15 = arith.constant 0 : index
      %21 = vector.load %arg5[%c0_14, %c0_15] : memref<32x128xf32, #tpu.memory_space<vmem>>, vector<32x1xf32>
      %c0_16 = arith.constant 0 : index
      %c0_17 = arith.constant 0 : index
      %c0_18 = arith.constant 0 : index
      %22 = vector.load %arg3[%c0_16, %c0_17, %c0_18] : memref<1x32x1xf32, #tpu.memory_space<vmem>>, vector<1x32x1xf32>
      %23 = vector.shape_cast %22 : vector<1x32x1xf32> to vector<32x1xf32>
      %24 = vector.shape_cast %21 : vector<32x1xf32> to vector<1x32x1xf32>
      tpu.vector_store %arg3[%c0_16, %c0_17, %c0_18], %24 {strides = array<i32>} : memref<1x32x1xf32, #tpu.memory_space<vmem>>, vector<1x32x1xf32>,
      %c0_19 = arith.constant 0 : index
      %c0_20 = arith.constant 0 : index
      %25 = vector.load %arg6[%c0_19, %c0_20] : memref<32x128xf32, #tpu.memory_space<vmem>>, vector<32x1xf32>
      %c0_21 = arith.constant 0 : index
      %c0_22 = arith.constant 0 : index
      %c0_23 = arith.constant 0 : index
      %26 = vector.load %arg4[%c0_21, %c0_22, %c0_23] : memref<1x32x1xf32, #tpu.memory_space<vmem>>, vector<1x32x1xf32>
      %27 = vector.shape_cast %26 : vector<1x32x1xf32> to vector<32x1xf32>
      %28 = vector.shape_cast %25 : vector<32x1xf32> to vector<1x32x1xf32>
      tpu.vector_store %arg4[%c0_21, %c0_22, %c0_23], %28 {strides = array<i32>} : memref<1x32x1xf32, #tpu.memory_space<vmem>>, vector<1x32x1xf32>,
    } else {
    }
    return
  }
  func.func @transform_0(%arg0: i32, %arg1: i32) -> (i32, i32, i32) {
    %c0_i32 = arith.constant 0 : i32
    %c0_i32_0 = arith.constant 0 : i32
    return %arg0, %c0_i32, %arg1 : i32, i32, i32
  }
  func.func @transform_1(%arg0: i32, %arg1: i32) -> (i32, i32, i32) {
    %c0_i32 = arith.constant 0 : i32
    %c0_i32_0 = arith.constant 0 : i32
    %c0_i32_1 = arith.constant 0 : i32
    return %arg0, %c0_i32, %c0_i32_0 : i32, i32, i32
  }
  func.func @transform_2(%arg0: i32, %arg1: i32) -> (i32, i32, i32) {
    %c0_i32 = arith.constant 0 : i32
    %c0_i32_0 = arith.constant 0 : i32
    %c0_i32_1 = arith.constant 0 : i32
    return %arg0, %c0_i32, %c0_i32_0 : i32, i32, i32
  }
}

</mosaic_0001>

<llo_original>
// kernel: tpu_custom_call.1
$region0: #{tpu_custom_call.1}
  #allocation0 [shape = 'u32[]', space=smem, size = 0x4, offset = 0x4, fixed_abs, tag = 'smem constant byte address 0x4 - core index']
  #allocation1 [shape = 'u32[72,128]{1,0:T(1,128)}', space=vmem, size = 0x9000, scoped, tag = 'internal scratch']
  #allocation2 [shape = 'f32[32,128]{1,0:T(8,128)}', space=vmem, size = 0x4000, scoped, tag = 'scratch operand']
  #allocation3 [shape = 'f32[32,128]{1,0:T(8,128)}', space=vmem, size = 0x4000, scoped, tag = 'scratch operand']
  %s0 = inlined_call_operand.hbm [shape: f32[2,32,64], index: 0, kind: input, shape index: {}]
  %s1 = inlined_call_operand.vmem [shape: f32[2,32,1], index: 1, kind: output, shape index: {0}]
  %s2 = inlined_call_operand.vmem [shape: f32[2,32,1], index: 2, kind: output, shape index: {1}]
  %3 = xla_tuple %s1, %s2
  %s4 = sld [smem:[#allocation0]]
  $region57: #{tpu_custom_call.1} parent=0
    _
  %s6 = ssub.s32 1, %s4
  %s7 = scalar_select 0, %s6, %s4
  $region1: #{tpu_custom_call.1} parent=0
    #allocation4 [shape = 'u8[32768]{0}', space=vmem, size = 0x8000, scoped, tag = 'input window, operand 0']
    #allocation5 [shape = 's32[2]{0}', space=sflag, size = 0x8, scoped, tag = 'scoped memory for tpu_custom_call.1']
    %8 = vsyncpa [#allocation5], 0
    %s9 = scalar_lea.sflag [#allocation5], 1
    %10 = vsyncpa %s9, 0
    loop: start=0, step=1, limit=4
    $region2: #{tpu_custom_call.1} parent=1 // loop_pre_header
      _
    $region3: #{tpu_custom_call.1} parent=1 // loop_header
      %s12 = sphi 0, %s16
      %p13 = scmp.ge.s32.totalorder %s12, 4
      %s19 = sphi 0, %s31
      %s20 = sphi 0, %s27
      %s21 = sphi 0, %s19
      %s22 = sphi 0, %s20
      %s23 = sphi 0, %s21
      %s24 = sphi 0, %s22
      %s36 = sphi 0, %s38
      %s39 = sphi 0, %s36
      %s40 = sphi 0, %s39
      %s56 = sphi 0, %s40
      %s62 = sphi 0, %s64
      %s65 = sphi 0, %s62
      %s66 = sphi 0, %s65
      %s82 = sphi 0, %s66
      %s88 = sphi 0, %s90
      %s91 = sphi 0, %s88
      %s92 = sphi 0, %s91
      %s108 = sphi 0, %s92
    $region4: #{tpu_custom_call.1} parent=1 // loop_header_branch
      %15 = sbr.rel (%p13) target = $region8
    $region5: #{tpu_custom_call.1} parent=1 // loop_body
      %s17 = ssub.s32 %s12, 1
      %s18 = ssub.s32 %s12, 2
      %s25 = sadd.s32 1, %s20
      %p26 = scmp.ge.s32.totalorder %s25, 1
      %s27 = scalar_select %p26, 0, %s25
      %s28 = sadd.s32 1, %s19
      %s29 = scalar_select %p26, %s28, %s19
      %p30 = scmp.ge.s32.totalorder %s29, 2
      %s31 = scalar_select %p30, 0, %s29
      %s32 = ssub.s32 %s19, %s31
      %s33 = ssub.s32 %s20, %s27
      %s34 = sor.u32 %s32, %s33
      %p35 = scmp.eq.s32.totalorder %s34, 0
      %s37 = sadd.s32 %s36, 1
      %s38 = scalar_select %p35, %s36, %s37
      %p41 = pneg %p35
      %p42 = scmp.eq.s32.totalorder %s12, 1
      %p43 = por %p41, %p42
      %p44 = scmp.ne.s32.totalorder %s36, %s39
      %p45 = scmp.eq.s32.totalorder %s12, 0
      %p46 = por %p44, %p45
      %p47 = scmp.ne.s32.totalorder %s36, %s39
      %p48 = scmp.eq.s32.totalorder %s17, 1
      %p49 = por %p47, %p48
      %p50 = scmp.ne.s32.totalorder %s39, %s40
      %p51 = scmp.eq.s32.totalorder %s17, 0
      %p52 = por %p50, %p51
      %p53 = scmp.ne.s32.totalorder %s39, %s40
      %p54 = scmp.eq.s32.totalorder %s18, 1
      %p55 = por %p53, %p54
      %p57 = scmp.ne.s32.totalorder %s40, %s56
      %p58 = scmp.eq.s32.totalorder %s18, 0
      %p59 = por %p57, %p58
      %s60 = ssub.s32 %s19, %s31
      %p61 = scmp.eq.s32.totalorder %s60, 0
      %s63 = sadd.s32 %s62, 1
      %s64 = scalar_select %p61, %s62, %s63
      %p67 = pneg %p61
      %p68 = scmp.eq.s32.totalorder %s12, 1
      %p69 = por %p67, %p68
      %p70 = scmp.ne.s32.totalorder %s62, %s65
      %p71 = scmp.eq.s32.totalorder %s12, 0
      %p72 = por %p70, %p71
      %p73 = scmp.ne.s32.totalorder %s62, %s65
      %p74 = scmp.eq.s32.totalorder %s17, 1
      %p75 = por %p73, %p74
      %p76 = scmp.ne.s32.totalorder %s65, %s66
      %p77 = scmp.eq.s32.totalorder %s17, 0
      %p78 = por %p76, %p77
      %p79 = scmp.ne.s32.totalorder %s65, %s66
      %p80 = scmp.eq.s32.totalorder %s18, 1
      %p81 = por %p79, %p80
      %p83 = scmp.ne.s32.totalorder %s66, %s82
      %p84 = scmp.eq.s32.totalorder %s18, 0
      %p85 = por %p83, %p84
      %s86 = ssub.s32 %s19, %s31
      %p87 = scmp.eq.s32.totalorder %s86, 0
      %s89 = sadd.s32 %s88, 1
      %s90 = scalar_select %p87, %s88, %s89
      %p93 = pneg %p87
      %p94 = scmp.eq.s32.totalorder %s12, 1
      %p95 = por %p93, %p94
      %p96 = scmp.ne.s32.totalorder %s88, %s91
      %p97 = scmp.eq.s32.totalorder %s12, 0
      %p98 = por %p96, %p97
      %p99 = scmp.ne.s32.totalorder %s88, %s91
      %p100 = scmp.eq.s32.totalorder %s17, 1
      %p101 = por %p99, %p100
      %p102 = scmp.ne.s32.totalorder %s91, %s92
      %p103 = scmp.eq.s32.totalorder %s17, 0
      %p104 = por %p102, %p103
      %p105 = scmp.ne.s32.totalorder %s91, %s92
      %p106 = scmp.eq.s32.totalorder %s18, 1
      %p107 = por %p105, %p106
      %p109 = scmp.ne.s32.totalorder %s92, %s108
      %p110 = scmp.eq.s32.totalorder %s18, 0
      %p111 = por %p109, %p110
      %p112 = scmp.le.s32.totalorder 1, %s12
      %p113 = scmp.lt.s32.totalorder %s12, 3
      %p114 = pnand %p112, %p113
      %p115 = pneg %p114
      // Predicated region
      $region9: #{tpu_custom_call.1} parent=5 // pred_check
        _
      $region10: #{tpu_custom_call.1} parent=5 // pred_check_branch
        %117 = sbr.rel (%p114) target = $region12
      $region11: #{tpu_custom_call.1} parent=5 // pred_region
        %s118 = ssub.s32 %s12, 1
      $region12: #{tpu_custom_call.1} parent=5 // pred_fallthru
        _
      %p119 = scmp.lt.s32.totalorder %s12, 2
      // Predicated region
      $region13: #{tpu_custom_call.1} parent=5 // pred_check
        %p120 = pneg %p119
      $region14: #{tpu_custom_call.1} parent=5 // pred_check_branch
        %122 = sbr.rel (%p120) target = $region16
      $region15: #{tpu_custom_call.1} parent=5 // pred_region
        // Predicated region
        $region17: #{tpu_custom_call.1} parent=15 // pred_check
          %p123 = pneg %p46
        $region18: #{tpu_custom_call.1} parent=15 // pred_check_branch
          %125 = sbr.rel (%p123) target = $region20
        $region19: #{tpu_custom_call.1} parent=15 // pred_region
          %s126 = sand.u32 %s36, 1
          %s127 = scalar_lea.sflag [#allocation5], %s126
          %s128 = sand.u32 %s36, 1
          %s129 = smul.addr %s128, 32
          %s130 = scalar_lea.vmem [#allocation4], %s129
          %132 = vsyncadd %s127, 0
          %s133 = smul.addr %s19, 4
          %s134 = sadd.s32 %s20, %s133
          %s135 = smul.addr %s134, 8
          %s136 = scalar_lea.hbm %s0, %s135
          %s137 = sshll.u32 %s136, 4
          %s138 = int_to_ptr.hbm [resolvable:$true] %s137
          %s139 = sshll.u32 %s130, 4
          %s140 = int_to_ptr.vmem [resolvable:$true] %s139
          %145 = dma.hbm_to_vmem [thread:$0]  %s138, 512, %s140, %s127, 128, 128, 8
        $region20: #{tpu_custom_call.1} parent=15 // pred_fallthru
          _
      $region16: #{tpu_custom_call.1} parent=5 // pred_fallthru
        _
      %p146 = scmp.le.s32.totalorder 1, %s12
      %p147 = scmp.lt.s32.totalorder %s12, 3
      %p148 = pnand %p146, %p147
      %p149 = pneg %p148
      // Predicated region
      $region21: #{tpu_custom_call.1} parent=5 // pred_check
        _
      $region22: #{tpu_custom_call.1} parent=5 // pred_check_branch
        %151 = sbr.rel (%p148) target = $region24
      $region23: #{tpu_custom_call.1} parent=5 // pred_region
        %s152 = ssub.s32 %s12, 1
        %s153 = sand.u32 %s39, 1
        %s154 = scalar_lea.sflag [#allocation5], %s153
        %s155 = sand.u32 %s39, 1
        %s156 = smul.addr %s155, 32
        %s157 = scalar_lea.vmem [#allocation4], %s156
        // Predicated region
        $region25: #{tpu_custom_call.1} parent=23 // pred_check
          %p158 = pneg %p52
        $region26: #{tpu_custom_call.1} parent=23 // pred_check_branch
          %160 = sbr.rel (%p158) target = $region28
        $region27: #{tpu_custom_call.1} parent=23 // pred_region
          %162 = dma.done %s154, 512
        $region28: #{tpu_custom_call.1} parent=23 // pred_fallthru
          _
        %s163 = sand.u32 %s39, 1
        %s164 = scalar_lea.sflag [#allocation5], %s163
        %s165 = sand.u32 %s39, 1
        %s166 = smul.addr %s165, 32
        %s167 = scalar_lea.vmem [#allocation4], %s166
        %p168 = pneg %p52
        %p169 = pneg %p49
        %p170 = pneg %p78
        %p171 = pneg %p75
        %p172 = scmp.lt.s32.totalorder %s21, 1
        %s173 = scalar_select %p172, %s21, 1
        %s174 = smul.addr %s173, 4
        %s175 = smul.addr %s174, 8
        %s176 = scalar_lea.vmem %s1, %s175
        %p177 = pneg %p104
        %p178 = pneg %p101
        %p179 = scmp.lt.s32.totalorder %s21, 1
        %s180 = scalar_select %p179, %s21, 1
        %s181 = smul.addr %s180, 4
        %s182 = smul.addr %s181, 8
        %s183 = scalar_lea.vmem %s2, %s182
        %p184 = scmp.lt.s32.totalorder %s21, 1
        %s185 = scalar_select %p184, %s21, 1
        %s186 = smul.addr %s185, 4
        %s187 = smul.addr %s186, 8
        %s188 = scalar_lea.vmem %s1, %s187
        %p189 = scmp.lt.s32.totalorder %s21, 1
        %s190 = scalar_select %p189, %s21, 1
        %s191 = smul.addr %s190, 4
        %s192 = smul.addr %s191, 8
        %s193 = scalar_lea.vmem %s2, %s192
        %p194 = scmp.eq.s32.totalorder %s22, 0
        // Predicated region
        $region29: #{tpu_custom_call.1} parent=23 // pred_check
          %p195 = pneg %p194
        $region30: #{tpu_custom_call.1} parent=23 // pred_check_branch
          %197 = sbr.rel (%p195) target = $region32
        $region31: #{tpu_custom_call.1} parent=23 // pred_region
          %198 = vst [vmem:[#allocation2] sm:$0xff] 0.0
          %199 = vst [vmem:[#allocation2 + $0x8] sm:$0xff] 0.0
          %200 = vst [vmem:[#allocation2 + $0x10] sm:$0xff] 0.0
          %201 = vst [vmem:[#allocation2 + $0x18] sm:$0xff] 0.0
          %202 = vst [vmem:[#allocation3] sm:$0xff] 0.0
          %203 = vst [vmem:[#allocation3 + $0x8] sm:$0xff] 0.0
          %204 = vst [vmem:[#allocation3 + $0x10] sm:$0xff] 0.0
          %205 = vst [vmem:[#allocation3 + $0x18] sm:$0xff] 0.0
        $region32: #{tpu_custom_call.1} parent=23 // pred_fallthru
          _
        %v206 = vld [vmem:[%s157] sm:$0xff]
        %v207 = vld [vmem:[%s157 + $0x8] sm:$0xff]
        %v208 = vld [vmem:[%s157 + $0x10] sm:$0xff]
        %v209 = vld [vmem:[%s157 + $0x18] sm:$0xff]
        %v210 = vld [vmem:[#allocation2] sm:$0xff]
        %v211 = vld [vmem:[#allocation2 + $0x8] sm:$0xff]
        %v212 = vld [vmem:[#allocation2 + $0x10] sm:$0xff]
        %v213 = vld [vmem:[#allocation2 + $0x18] sm:$0xff]
        %vm214 = vcmask 523264
        %v215 = vsel %vm214, %v206, 0.0
        %216 = vadd.xlane.f32.xlu0 %v215
        %v217 = vpop.xlane.xlu0 %216
        %v218 = vsel %vm214, %v207, 0.0
        %219 = vadd.xlane.f32.xlu0 %v218
        %v220 = vpop.xlane.xlu0 %219
        %v221 = vsel %vm214, %v208, 0.0
        %222 = vadd.xlane.f32.xlu0 %v221
        %v223 = vpop.xlane.xlu0 %222
        %v224 = vsel %vm214, %v209, 0.0
        %225 = vadd.xlane.f32.xlu0 %v224
        %v226 = vpop.xlane.xlu0 %225
        %v227 = vadd.f32 %v210, %v217
        %v228 = vadd.f32 %v211, %v220
        %v229 = vadd.f32 %v212, %v223
        %v230 = vadd.f32 %v213, %v226
        %231 = vst [vmem:[#allocation2] sm:$0xff] %v227
        %232 = vst [vmem:[#allocation2 + $0x8] sm:$0xff] %v228
        %233 = vst [vmem:[#allocation2 + $0x10] sm:$0xff] %v229
        %234 = vst [vmem:[#allocation2 + $0x18] sm:$0xff] %v230
        %v235 = vld [vmem:[#allocation3] sm:$0xff]
        %v236 = vld [vmem:[#allocation3 + $0x8] sm:$0xff]
        %v237 = vld [vmem:[#allocation3 + $0x10] sm:$0xff]
        %v238 = vld [vmem:[#allocation3 + $0x18] sm:$0xff]
        %v239 = vmul.f32 %v206, %v206
        %v240 = vmul.f32 %v207, %v207
        %v241 = vmul.f32 %v208, %v208
        %v242 = vmul.f32 %v209, %v209
        %v243 = vsel %vm214, %v239, 0.0
        %244 = vadd.xlane.f32.xlu0 %v243
        %v245 = vpop.xlane.xlu0 %244
        %v246 = vsel %vm214, %v240, 0.0
        %247 = vadd.xlane.f32.xlu0 %v246
        %v248 = vpop.xlane.xlu0 %247
        %v249 = vsel %vm214, %v241, 0.0
        %250 = vadd.xlane.f32.xlu0 %v249
        %v251 = vpop.xlane.xlu0 %250
        %v252 = vsel %vm214, %v242, 0.0
        %253 = vadd.xlane.f32.xlu0 %v252
        %v254 = vpop.xlane.xlu0 %253
        %v255 = vadd.f32 %v235, %v245
        %v256 = vadd.f32 %v236, %v248
        %v257 = vadd.f32 %v237, %v251
        %v258 = vadd.f32 %v238, %v254
        %259 = vst [vmem:[#allocation3] sm:$0xff] %v255
        %260 = vst [vmem:[#allocation3 + $0x8] sm:$0xff] %v256
        %261 = vst [vmem:[#allocation3 + $0x10] sm:$0xff] %v257
        %262 = vst [vmem:[#allocation3 + $0x18] sm:$0xff] %v258
        // Predicated region
        $region33: #{tpu_custom_call.1} parent=23 // pred_check
          %p263 = pneg %p194
        $region34: #{tpu_custom_call.1} parent=23 // pred_check_branch
          %265 = sbr.rel (%p263) target = $region36
        $region35: #{tpu_custom_call.1} parent=23 // pred_region
          %v266 = vld [vmem:[#allocation2] sm:$0xff]
          %v267 = vld [vmem:[#allocation2 + $0x8] sm:$0xff]
          %v268 = vld [vmem:[#allocation2 + $0x10] sm:$0xff]
          %v269 = vld [vmem:[#allocation2 + $0x18] sm:$0xff]
          %vm270 = vcmask 7168
          %271 = vst.msk [vmem:[%s188] sm:$0xff] %vm270, %v266
          %272 = vst.msk [vmem:[%s188 + $0x8] sm:$0xff] %vm270, %v267
          %273 = vst.msk [vmem:[%s188 + $0x10] sm:$0xff] %vm270, %v268
          %274 = vst.msk [vmem:[%s188 + $0x18] sm:$0xff] %vm270, %v269
          %v275 = vld [vmem:[#allocation3] sm:$0xff]
          %v276 = vld [vmem:[#allocation3 + $0x8] sm:$0xff]
          %v277 = vld [vmem:[#allocation3 + $0x10] sm:$0xff]
          %v278 = vld [vmem:[#allocation3 + $0x18] sm:$0xff]
          %279 = vst.msk [vmem:[%s193] sm:$0xff] %vm270, %v275
          %280 = vst.msk [vmem:[%s193 + $0x8] sm:$0xff] %vm270, %v276
          %281 = vst.msk [vmem:[%s193 + $0x10] sm:$0xff] %vm270, %v277
          %282 = vst.msk [vmem:[%s193 + $0x18] sm:$0xff] %vm270, %v278
        $region36: #{tpu_custom_call.1} parent=23 // pred_fallthru
          _
        %p283 = scmp.lt.s32.totalorder %s21, 1
        %s284 = scalar_select %p283, %s21, 1
        %s285 = smul.addr %s284, 4
        %s286 = smul.addr %s285, 8
        %s287 = scalar_lea.vmem %s1, %s286
        %p288 = scmp.lt.s32.totalorder %s21, 1
        %s289 = scalar_select %p288, %s21, 1
        %s290 = smul.addr %s289, 4
        %s291 = smul.addr %s290, 8
        %s292 = scalar_lea.vmem %s2, %s291
        // Predicated region
        $region37: #{tpu_custom_call.1} parent=23 // pred_check
          %p293 = pneg %p75
        $region38: #{tpu_custom_call.1} parent=23 // pred_check_branch
          %295 = sbr.rel (%p293) target = $region40
        $region39: #{tpu_custom_call.1} parent=23 // pred_region
          _
        $region40: #{tpu_custom_call.1} parent=23 // pred_fallthru
          _
        // Predicated region
        $region41: #{tpu_custom_call.1} parent=23 // pred_check
          %p296 = pneg %p101
        $region42: #{tpu_custom_call.1} parent=23 // pred_check_branch
          %298 = sbr.rel (%p296) target = $region44
        $region43: #{tpu_custom_call.1} parent=23 // pred_region
          _
        $region44: #{tpu_custom_call.1} parent=23 // pred_fallthru
          _
      $region24: #{tpu_custom_call.1} parent=5 // pred_fallthru
        _
      %p299 = scmp.le.s32.totalorder 2, %s12
      // Predicated region
      $region45: #{tpu_custom_call.1} parent=5 // pred_check
        %p300 = pneg %p299
      $region46: #{tpu_custom_call.1} parent=5 // pred_check_branch
        %302 = sbr.rel (%p300) target = $region48
      $region47: #{tpu_custom_call.1} parent=5 // pred_region
        %s303 = ssub.s32 %s12, 2
        // Predicated region
        $region49: #{tpu_custom_call.1} parent=47 // pred_check
          %p304 = pneg %p81
        $region50: #{tpu_custom_call.1} parent=47 // pred_check_branch
          %306 = sbr.rel (%p304) target = $region52
        $region51: #{tpu_custom_call.1} parent=47 // pred_region
          %p307 = scmp.lt.s32.totalorder %s23, 1
          %s308 = scalar_select %p307, %s23, 1
          %s309 = smul.addr %s308, 4
          %s310 = smul.addr %s309, 8
          %s311 = scalar_lea.vmem %s1, %s310
        $region52: #{tpu_custom_call.1} parent=47 // pred_fallthru
          _
        // Predicated region
        $region53: #{tpu_custom_call.1} parent=47 // pred_check
          %p312 = pneg %p107
        $region54: #{tpu_custom_call.1} parent=47 // pred_check_branch
          %314 = sbr.rel (%p312) target = $region56
        $region55: #{tpu_custom_call.1} parent=47 // pred_region
          %p315 = scmp.lt.s32.totalorder %s23, 1
          %s316 = scalar_select %p315, %s23, 1
          %s317 = smul.addr %s316, 4
          %s318 = smul.addr %s317, 8
          %s319 = scalar_lea.vmem %s2, %s318
        $region56: #{tpu_custom_call.1} parent=47 // pred_fallthru
          _
      $region48: #{tpu_custom_call.1} parent=5 // pred_fallthru
        _
    $region6: #{tpu_custom_call.1} parent=1 // loop_footer
      %s16 = sadd.s32 1, %s12
    $region7: #{tpu_custom_call.1} parent=1 // loop_footer_branch
      %11 = sbr.rel target = $region3
    $region8: #{tpu_custom_call.1} parent=1 // loop_exit
      _
    %320 = vsyncpa [#allocation5], 1
    %s321 = scalar_lea.sflag [#allocation5], 1
    %322 = vsyncpa %s321, 1

</llo_original>
